<compile_context>
chip_gen: v7x
topology: tpu7x:2x2x1
jax: 0.10.0
libtpu: 0.0.40
codegen_flags: <defaults>
</compile_context>

<pallas_src>
import functools

import numpy as np

import jax
import jax.numpy as jnp
from jax import lax
from jax.experimental import pallas as pl
from jax.experimental.pallas import tpu as pltpu

_LANE = 128
_SUBLANE_F32 = 8
_SUBLANE_BF16 = 16


def _round_up(x, m):
    return (x + m - 1) // m * m


def _cdiv(a, b):
    return (a + b - 1) // b


def _disc_loss_kernel(nobj_ref, pred_ref, gt_ref, out_ref,
                      num_scr, cnt_scr, m2_scr, var_scr, *,
                      n_instances, delta_v, delta_d, norm):
    """Grid = (bs, 2, n_tiles).
    Phase 0: accumulate cluster-mean numerators + per-instance pixel counts; finalize means.
    Phase 1: accumulate the variance numerator (owning-cluster only, gt is one-hot); on the
             last tile finalize distance/regularization terms and write (var, dist, reg)
             to lanes 0..2 of the per-sample output block."""
    b = pl.program_id(0)
    ph = pl.program_id(1)
    t = pl.program_id(2)
    n_tiles = pl.num_programs(2)

    p = pred_ref[0]                              # (n_filters, tile)  f32, pixels on lanes
    g = gt_ref[0]                                # (n_instances, tile) bf16 one-hot mask
    g32 = g.astype(jnp.float32)

    # ----------------- phase 0: cluster-mean numerator + per-instance pixel counts
    @pl.when(ph == 0)
    def _phase0():
        @pl.when(t == 0)
        def _init():
            num_scr[...] = jnp.zeros_like(num_scr)
            cnt_scr[...] = jnp.zeros_like(cnt_scr)

        # gt @ pred^T : contraction over the pixel (lane) axis.  bf16 operands into the MXU
        # (no native f32 path on any gen), f32 accumulation.
        # TODO(synk): for very small n_instances*n_filters the MXU is weight-latch bound;
        # if vmatmul dominates the bundle, move this contraction to a VPU loop.
        num_scr[...] += lax.dot_general(
            g, p.astype(jnp.bfloat16), (((1,), (1,)), ((), ())),
            preferred_element_type=jnp.float32)
        cnt_scr[...] += jnp.sum(g32, axis=1, keepdims=True)

        @pl.when(t == n_tiles - 1)
        def _finish_means():
            cnt = cnt_scr[...]
            means = num_scr[...] / jnp.where(cnt > 0.0, cnt, 1.0)
            num_scr[...] = means                                         # reuse as means buf
            m2_scr[...] = jnp.sum(means * means, axis=1, keepdims=True)  # hoisted ||m||^2

    # ----------------- phase 1: variance accumulation + finalize
    @pl.when(ph == 1)
    def _phase1():
        @pl.when(t == 0)
        def _init():
            var_scr[...] = jnp.zeros_like(var_scr)

        m = num_scr[...]                                        # (ni, nf) cluster means
        gsum = jnp.sum(g32, axis=0, keepdims=True)              # (1, tile) pixel validity

        if norm == 2:
            # gt is one-hot -> only the owning cluster contributes; collapse the instance
            # axis before sqrt/hinge:  ||p - m_own||^2 = ||p||^2 - 2 m_own.p + ||m_own||^2
            mp = lax.dot_general(m.astype(jnp.bfloat16), p.astype(jnp.bfloat16),
                                 (((1,), (0,)), ((), ())),
                                 preferred_element_type=jnp.float32)       # (ni, tile)
            mp_own = jnp.sum(g32 * mp, axis=0, keepdims=True)              # (1, tile)
            m2_own = jnp.sum(g32 * m2_scr[...], axis=0, keepdims=True)     # (1, tile)
            p2 = jnp.sum(p * p, axis=0, keepdims=True)                     # (1, tile)
            d = jnp.sqrt(jnp.maximum(p2 - 2.0 * mp_own + m2_own, 0.0))     # (1, tile)
        else:
            # L1: owning mean per pixel via one instance-contraction matmul — avoids the
            # (ni, nf, tile) broadcast intermediate.
            m_own = lax.dot_general(m.astype(jnp.bfloat16), g,
                                    (((0,), (0,)), ((), ())),
                                    preferred_element_type=jnp.float32)    # (nf, tile)
            d = jnp.sum(jnp.abs(p - m_own), axis=0, keepdims=True)         # (1, tile)

        hinge = jnp.maximum(d - delta_v, 0.0)
        var_scr[...] += jnp.sum(hinge * hinge * gsum, axis=1, keepdims=True)

        @pl.when(t == n_tiles - 1)
        def _finalize():
            n_obj = nobj_ref[b]
            n_obj_f = n_obj.astype(jnp.float32)
            valid = (lax.broadcasted_iota(jnp.int32, (n_instances, 1), 0)
                     < n_obj).astype(jnp.float32)                          # (ni, 1)
            valid_col = (lax.broadcasted_iota(jnp.int32, (1, n_instances), 1)
                         < n_obj).astype(jnp.float32)                      # (1, ni)
            mm = num_scr[...]                                              # means

            # --- variance term (numerator already owning-cluster masked via one-hot gt)
            var_num = jnp.sum(var_scr[...])
            var_den = jnp.sum(cnt_scr[...] * valid)
            var_i = var_num / jnp.where(var_den > 0.0, var_den, 1.0)

            # --- distance term (pairwise hinge on cluster-mean distances; tiny, kept f32)
            row_i = lax.broadcasted_iota(jnp.int32, (n_instances, n_instances), 0)
            col_i = lax.broadcasted_iota(jnp.int32, (n_instances, n_instances), 1)
            eye = (row_i == col_i).astype(jnp.float32)
            if norm == 2:
                gram = lax.dot_general(mm, mm, (((1,), (1,)), ((), ())),
                                       preferred_element_type=jnp.float32)  # (ni, ni)
                sq_row = jnp.sum(gram * eye, axis=1, keepdims=True)          # diag -> (ni, 1)
                sq_col = jnp.sum(gram * eye, axis=0, keepdims=True)          # diag -> (1, ni)
                dpair = jnp.sqrt(jnp.maximum(sq_row + sq_col - 2.0 * gram, 0.0))
            else:
                dpair = jnp.sum(jnp.abs(mm[:, None, :] - mm[None, :, :]), axis=2)
            margin = (2.0 * delta_d) * (1.0 - eye)
            hp = jnp.maximum(margin - dpair, 0.0)
            dist_sum = jnp.sum(hp * hp * (valid * valid_col))
            pair_den = jnp.maximum(n_obj_f * (n_obj_f - 1.0), 1.0)
            dist_i = jnp.where(n_obj > 1, dist_sum / pair_den, 0.0)

            # --- regularization term (reuses hoisted ||m||^2 for the L2 path)
            if norm == 2:
                reg_rows = jnp.sqrt(jnp.maximum(m2_scr[...], 0.0))           # (ni, 1)
            else:
                reg_rows = jnp.sum(jnp.abs(mm), axis=1, keepdims=True)
            reg_i = jnp.sum(reg_rows * valid) / jnp.maximum(n_obj_f, 1.0)

            # pack (var, dist, reg) into lanes 0..2 of the per-sample output block
            lane = lax.broadcasted_iota(jnp.int32, (8, _LANE), 1)
            vec = (jnp.where(lane == 0, var_i, 0.0)
                   + jnp.where(lane == 1, dist_i, 0.0)
                   + jnp.where(lane == 2, reg_i, 0.0))
            out_ref[0] = vec


def discriminative_loss_pallas(inp, tgt, n_objects, max_n_objects,
                               delta_v, delta_d, norm):
    bs, n_filters, h, w = inp.shape
    n_instances = tgt.shape[1]
    assert n_instances == max_n_objects, "kernel assumes n_instances == max_n_objects"
    n_loc = h * w

    # Channel-major, lane-dense layout (no NCHW->NHWC transpose): pixels on lanes.
    pred = inp.reshape(bs, n_filters, n_loc).astype(jnp.float32)
    # gt is a 0/1 instance mask -> bf16 is exact and halves its HBM->VMEM traffic.
    gt = tgt.reshape(bs, n_instances, n_loc).astype(jnp.bfloat16)
    nobj = n_objects.astype(jnp.int32)

    # ---- generation-aware VMEM budget -> tile size (v5e/v6e: 128 MiB, v7x: 64 MiB).
    try:
        vmem_cap = int(pltpu.get_tpu_info().vmem_capacity_bytes)
    except Exception:
        vmem_cap = 64 * 1024 * 1024            # conservative (v7x-sized) fallback
    vmem_limit = min(vmem_cap * 3 // 4, 112 * 1024 * 1024)

    # VMEM bytes/pixel of the two streamed blocks (with sublane padding), x2 pipeline bufs,
    # with a few MiB reserved for scratch / output / Mosaic internals.
    padded_bpp = (_round_up(n_filters, _SUBLANE_F32) * 4
                  + _round_up(n_instances, _SUBLANE_BF16) * 2)
    block_budget = max(vmem_limit - 4 * 1024 * 1024, 1 * 1024 * 1024)
    max_tile = max(block_budget // (2 * padded_bpp), _LANE)

    if n_loc <= max_tile:
        # Full-sample residency: the pixel axis is one block equal to the full array dim
        # (no (8,128) divisibility or padding needed).  With n_tiles == 1 the pred/gt
        # index_map returns the same block for both phases, so Pallas keeps the blocks
        # resident and each sample is streamed from HBM exactly once.
        tile, n_tiles = n_loc, 1
    else:
        tile_cap = max((max_tile // _LANE) * _LANE, _LANE)
        n_loc_128 = _round_up(n_loc, _LANE)
        n_tiles = _cdiv(n_loc_128, tile_cap)
        tile = _round_up(_cdiv(n_loc_128, n_tiles), _LANE)   # minimal pad for this n_tiles
        pad = n_tiles * tile - n_loc
        # TODO(synk): this pad materializes one extra HBM copy of pred/gt; it is only taken
        # when a single sample exceeds the VMEM budget (very large feature maps).
        pred = jnp.pad(pred, ((0, 0), (0, 0), (0, pad)))
        gt = jnp.pad(gt, ((0, 0), (0, 0), (0, pad)))

    kernel = functools.partial(_disc_loss_kernel,
                               n_instances=n_instances,
                               delta_v=float(delta_v),
                               delta_d=float(delta_d),
                               norm=int(norm))

    def px_index(b, ph, t, n_ref):
        # Serpentine: phase 1 walks tiles in reverse so the last phase-0 tile is reused at
        # the phase boundary without a re-fetch (with n_tiles == 1 the block never changes).
        return (b, 0, ph * (n_tiles - 1) + (1 - 2 * ph) * t)

    out = pl.pallas_call(
        kernel,
        out_shape=jax.ShapeDtypeStruct((bs, 8, _LANE), jnp.float32),
        grid_spec=pltpu.PrefetchScalarGridSpec(
            num_scalar_prefetch=1,
            grid=(bs, 2, n_tiles),
            in_specs=[
                pl.BlockSpec((1, n_filters, tile), px_index),
                pl.BlockSpec((1, n_instances, tile), px_index),
            ],
            out_specs=pl.BlockSpec((1, 8, _LANE), lambda b, ph, t, n_ref: (b, 0, 0)),
            scratch_shapes=[
                pltpu.VMEM((n_instances, n_filters), jnp.float32),  # numerator -> means
                pltpu.VMEM((n_instances, 1), jnp.float32),          # per-instance counts
                pltpu.VMEM((n_instances, 1), jnp.float32),          # hoisted ||mean||^2
                pltpu.VMEM((1, 1), jnp.float32),                    # variance-numerator acc
            ],
        ),
        compiler_params=pltpu.CompilerParams(
            # batch axis is megacore-shardable (per-sample outputs); phase/tile carry state.
            dimension_semantics=("parallel", "arbitrary", "arbitrary"),
            vmem_limit_bytes=int(vmem_limit),
        ),
    )(nobj, pred, gt)

    terms = out[:, 0, :3]                      # (bs, 3): var, dist, reg per sample
    alpha = beta = 1.0
    gamma = 0.001
    loss = jnp.sum(alpha * terms[:, 0] + beta * terms[:, 1] + gamma * terms[:, 2]) / bs
    return loss


def reference_loss(inp, tgt, n_objects, max_n_objects, delta_v, delta_d, norm):
    """Pure numpy re-implementation of the PyTorch forward (for verification)."""
    inp = np.asarray(inp, np.float32)
    tgt = np.asarray(tgt, np.float32)
    bs, nf, h, w = inp.shape
    pred = inp.transpose(0, 2, 3, 1).reshape(bs, h * w, nf)
    gt = tgt.transpose(0, 2, 3, 1).reshape(bs, h * w, tgt.shape[1])

    def pnorm(x, axis):
        if norm == 1:
            return np.sum(np.abs(x), axis=axis)
        return np.sqrt(np.sum(x * x, axis=axis))

    var_t = dist_t = reg_t = 0.0
    for i in range(bs):
        no = int(n_objects[i])
        p = pred[i]
        g = gt[i][:, :no]
        means = (p[:, None, :] * g[:, :, None]).sum(0) / g.sum(0)[:, None]   # (no, nf)
        d = pnorm(p[:, None, :] - means[None, :, :], axis=2)                 # (n_loc, no)
        var_t += (np.maximum(d - delta_v, 0.0) ** 2 * g).sum() / g.sum()
        if no > 1:
            dm = pnorm(means[:, None, :] - means[None, :, :], axis=2)
            margin = 2.0 * delta_d * (1.0 - np.eye(no))
            dist_t += (np.maximum(margin - dm, 0.0) ** 2).sum() / (no * (no - 1))
        reg_t += pnorm(means, axis=1).mean()
    return (1.0 * var_t + 1.0 * dist_t + 0.001 * reg_t) / bs


if __name__ == "__main__":
    key = jax.random.PRNGKey(0)
    bs, n_filters, H, W = 2, 4, 16, 16
    max_n_objects = 4
    n_objects = jnp.array([3, 4], dtype=jnp.int32)

    # Hyperparameters (DiscriminativeLoss(delta_var, delta_dist, norm))
    delta_var, delta_dist, norm = 0.5, 1.5, 2

    k1, k2 = jax.random.split(key)
    x = jax.random.normal(k1, (bs, n_filters, H, W), dtype=jnp.float32)

    # One-hot instance targets: each pixel belongs to one of n_objects[i] instances.
    labels = []
    for i in range(bs):
        ki = jax.random.fold_in(k2, i)
        labels.append(jax.random.randint(ki, (H, W), 0, int(n_objects[i])))
    labels = jnp.stack(labels)                                               # (bs, H, W)
    target = jax.nn.one_hot(labels, max_n_objects, dtype=jnp.float32)        # (bs, H, W, ni)
    target = jnp.transpose(target, (0, 3, 1, 2))                             # NCHW

    loss = discriminative_loss_pallas(x, target, n_objects, max_n_objects,
                                      delta_var, delta_dist, norm)
    loss = jax.block_until_ready(loss)

    ref = reference_loss(np.array(x), np.array(target), np.array(n_objects),
                         max_n_objects, delta_var, delta_dist, norm)
    # Tolerance reflects bf16 MXU operands (f32 accumulation) vs. the f32 numpy reference.
    assert np.allclose(np.array(loss), ref, rtol=5e-3, atol=5e-3), (float(loss), float(ref))

    print("KERNEL_OK")
</pallas_src>

<mosaic_0001>
module attributes {stable_mosaic.version = 11 : i64} {
  func.func @_disc_loss_kernel(%arg0: i32, %arg1: i32, %arg2: i32, %arg3: memref<2xi32, #tpu.memory_space<smem>>, %arg4: memref<1x4x256xf32, #tpu.memory_space<vmem>>, %arg5: memref<1x4x256xbf16, #tpu.memory_space<vmem>>, %arg6: memref<1x8x128xf32, #tpu.memory_space<vmem>>, %arg7: memref<4x4xf32, #tpu.memory_space<vmem>>, %arg8: memref<4x1xf32, #tpu.memory_space<vmem>>, %arg9: memref<4x1xf32, #tpu.memory_space<vmem>>, %arg10: memref<1x1xf32, #tpu.memory_space<vmem>>) attributes {dimension_semantics = [#tpu.dimension_semantics<parallel>, #tpu.dimension_semantics<arbitrary>, #tpu.dimension_semantics<arbitrary>], iteration_bounds = array<i64: 2, 2, 1>, scalar_prefetch = 1 : i64, scratch_operands = 4 : i64, tpu.core_type = #tpu.core_type<tc>, window_params = [{transform_indices = @transform_0, window_bounds = array<i64: 1, 4, 256>}, {transform_indices = @transform_1, window_bounds = array<i64: 1, 4, 256>}, {transform_indices = @transform_2, window_bounds = array<i64: 1, 8, 128>}]} {
    %c0 = arith.constant 0 : index
    %c0_0 = arith.constant 0 : index
    %c0_1 = arith.constant 0 : index
    %0 = vector.load %arg4[%c0, %c0_0, %c0_1] : memref<1x4x256xf32, #tpu.memory_space<vmem>>, vector<1x4x256xf32>
    %1 = vector.shape_cast %0 : vector<1x4x256xf32> to vector<4x256xf32>
    %c0_2 = arith.constant 0 : index
    %c0_3 = arith.constant 0 : index
    %c0_4 = arith.constant 0 : index
    %2 = vector.load %arg5[%c0_2, %c0_3, %c0_4] : memref<1x4x256xbf16, #tpu.memory_space<vmem>>, vector<1x4x256xbf16>
    %3 = vector.shape_cast %2 : vector<1x4x256xbf16> to vector<4x256xbf16>
    %4 = arith.extf %3 : vector<4x256xbf16> to vector<4x256xf32>
    %c0_i32 = arith.constant 0 : i32
    %5 = arith.cmpi eq, %arg1, %c0_i32 : i32
    %6 = arith.extui %5 : i1 to i32
    %c0_i32_5 = arith.constant 0 : i32
    %7 = arith.cmpi ne, %6, %c0_i32_5 : i32
    scf.if %7 {
      %c0_i32_7 = arith.constant 0 : i32
      %11 = arith.cmpi eq, %arg2, %c0_i32_7 : i32
      %12 = arith.extui %11 : i1 to i32
      %c0_i32_8 = arith.constant 0 : i32
      %13 = arith.cmpi ne, %12, %c0_i32_8 : i32
      scf.if %13 {
        %cst_20 = arith.constant 0.000000e+00 : f32
        %27 = vector.broadcast %cst_20 : f32 to vector<4x4xf32>
        %c0_21 = arith.constant 0 : index
        %c0_22 = arith.constant 0 : index
        %28 = vector.load %arg7[%c0_21, %c0_22] : memref<4x4xf32, #tpu.memory_space<vmem>>, vector<4x4xf32>
        tpu.vector_store %arg7[%c0_21, %c0_22], %27 {strides = array<i32>} : memref<4x4xf32, #tpu.memory_space<vmem>>, vector<4x4xf32>,
        %cst_23 = arith.constant 0.000000e+00 : f32
        %29 = vector.broadcast %cst_23 : f32 to vector<4x1xf32>
        %c0_24 = arith.constant 0 : index
        %c0_25 = arith.constant 0 : index
        %30 = vector.load %arg8[%c0_24, %c0_25] : memref<4x1xf32, #tpu.memory_space<vmem>>, vector<4x1xf32>
        tpu.vector_store %arg8[%c0_24, %c0_25], %29 {strides = array<i32>} : memref<4x1xf32, #tpu.memory_space<vmem>>, vector<4x1xf32>,
      } else {
      }
      %c0_9 = arith.constant 0 : index
      %c0_10 = arith.constant 0 : index
      %14 = vector.load %arg7[%c0_9, %c0_10] : memref<4x4xf32, #tpu.memory_space<vmem>>, vector<4x4xf32>
      %15 = arith.truncf %1 : vector<4x256xf32> to vector<4x256xbf16>
      %cst = arith.constant dense<0.000000e+00> : vector<4x4xf32>
      %16 = tpu.matmul %3, %15, %cst {dimension_numbers = #tpu.dot_dimension_numbers<[1], [1], [0], [0], [0, 0, 1, 0], [], []>} : vector<4x256xbf16>, vector<4x256xbf16>, vector<4x4xf32> -> vector<4x4xf32>
      %17 = arith.addf %14, %16 : vector<4x4xf32>
      %c0_11 = arith.constant 0 : index
      %c0_12 = arith.constant 0 : index
      %18 = vector.load %arg7[%c0_11, %c0_12] : memref<4x4xf32, #tpu.memory_space<vmem>>, vector<4x4xf32>
      tpu.vector_store %arg7[%c0_11, %c0_12], %17 {strides = array<i32>} : memref<4x4xf32, #tpu.memory_space<vmem>>, vector<4x4xf32>,
      %c0_13 = arith.constant 0 : index
      %c0_14 = arith.constant 0 : index
      %19 = vector.load %arg8[%c0_13, %c0_14] : memref<4x1xf32, #tpu.memory_space<vmem>>, vector<4x1xf32>
      %cst_15 = arith.constant dense<0.000000e+00> : vector<4xf32>
      %20 = vector.multi_reduction <add>, %4, %cst_15 [1] : vector<4x256xf32> to vector<4xf32>
      %21 = vector.shape_cast %20 : vector<4xf32> to vector<4x1xf32>
      %22 = arith.addf %19, %21 : vector<4x1xf32>
      %c0_16 = arith.constant 0 : index
      %c0_17 = arith.constant 0 : index
      %23 = vector.load %arg8[%c0_16, %c0_17] : memref<4x1xf32, #tpu.memory_space<vmem>>, vector<4x1xf32>
      tpu.vector_store %arg8[%c0_16, %c0_17], %22 {strides = array<i32>} : memref<4x1xf32, #tpu.memory_space<vmem>>, vector<4x1xf32>,
      %c0_i32_18 = arith.constant 0 : i32
      %24 = arith.cmpi eq, %arg2, %c0_i32_18 : i32
      %25 = arith.extui %24 : i1 to i32
      %c0_i32_19 = arith.constant 0 : i32
      %26 = arith.cmpi ne, %25, %c0_i32_19 : i32
      scf.if %26 {
        %c0_20 = arith.constant 0 : index
        %c0_21 = arith.constant 0 : index
        %27 = vector.load %arg8[%c0_20, %c0_21] : memref<4x1xf32, #tpu.memory_space<vmem>>, vector<4x1xf32>
        %c0_22 = arith.constant 0 : index
        %c0_23 = arith.constant 0 : index
        %28 = vector.load %arg7[%c0_22, %c0_23] : memref<4x4xf32, #tpu.memory_space<vmem>>, vector<4x4xf32>
        %cst_24 = arith.constant 0.000000e+00 : f32
        %29 = vector.broadcast %cst_24 : f32 to vector<4x1xf32>
        %30 = arith.cmpf ogt, %27, %29 : vector<4x1xf32>
        %cst_25 = arith.constant 1.000000e+00 : f32
        %31 = vector.broadcast %cst_25 : f32 to vector<4x1xf32>
        %32 = arith.select %30, %27, %31 : vector<4x1xi1>, vector<4x1xf32>
        %33 = vector.broadcast %32 : vector<4x1xf32> to vector<4x4xf32>
        %34 = arith.divf %28, %33 : vector<4x4xf32>
        %c0_26 = arith.constant 0 : index
        %c0_27 = arith.constant 0 : index
        %35 = vector.load %arg7[%c0_26, %c0_27] : memref<4x4xf32, #tpu.memory_space<vmem>>, vector<4x4xf32>
        tpu.vector_store %arg7[%c0_26, %c0_27], %34 {strides = array<i32>} : memref<4x4xf32, #tpu.memory_space<vmem>>, vector<4x4xf32>,
        %36 = arith.mulf %34, %34 : vector<4x4xf32>
        %cst_28 = arith.constant dense<0.000000e+00> : vector<4xf32>
        %37 = vector.multi_reduction <add>, %36, %cst_28 [1] : vector<4x4xf32> to vector<4xf32>
        %38 = vector.shape_cast %37 : vector<4xf32> to vector<4x1xf32>
        %c0_29 = arith.constant 0 : index
        %c0_30 = arith.constant 0 : index
        %39 = vector.load %arg9[%c0_29, %c0_30] : memref<4x1xf32, #tpu.memory_space<vmem>>, vector<4x1xf32>
        tpu.vector_store %arg9[%c0_29, %c0_30], %38 {strides = array<i32>} : memref<4x1xf32, #tpu.memory_space<vmem>>, vector<4x1xf32>,
      } else {
      }
    } else {
    }
    %c1_i32 = arith.constant 1 : i32
    %8 = arith.cmpi eq, %arg1, %c1_i32 : i32
    %9 = arith.extui %8 : i1 to i32
    %c0_i32_6 = arith.constant 0 : i32
    %10 = arith.cmpi ne, %9, %c0_i32_6 : i32
    scf.if %10 {
      %c0_i32_7 = arith.constant 0 : i32
      %11 = arith.cmpi eq, %arg2, %c0_i32_7 : i32
      %12 = arith.extui %11 : i1 to i32
      %c0_i32_8 = arith.constant 0 : i32
      %13 = arith.cmpi ne, %12, %c0_i32_8 : i32
      scf.if %13 {
        %cst_28 = arith.constant 0.000000e+00 : f32
        %52 = vector.broadcast %cst_28 : f32 to vector<1x1xf32>
        %c0_29 = arith.constant 0 : index
        %c0_30 = arith.constant 0 : index
        %53 = vector.load %arg10[%c0_29, %c0_30] : memref<1x1xf32, #tpu.memory_space<vmem>>, vector<1x1xf32>
        tpu.vector_store %arg10[%c0_29, %c0_30], %52 {strides = array<i32>} : memref<1x1xf32, #tpu.memory_space<vmem>>, vector<1x1xf32>,
      } else {
      }
      %c0_9 = arith.constant 0 : index
      %c0_10 = arith.constant 0 : index
      %14 = vector.load %arg7[%c0_9, %c0_10] : memref<4x4xf32, #tpu.memory_space<vmem>>, vector<4x4xf32>
      %cst = arith.constant dense<0.000000e+00> : vector<256xf32>
      %15 = vector.multi_reduction <add>, %4, %cst [0] : vector<4x256xf32> to vector<256xf32>
      %16 = vector.shape_cast %15 : vector<256xf32> to vector<1x256xf32>
      %17 = arith.truncf %14 : vector<4x4xf32> to vector<4x4xbf16>
      %18 = arith.truncf %1 : vector<4x256xf32> to vector<4x256xbf16>
      %cst_11 = arith.constant dense<0.000000e+00> : vector<4x256xf32>
      %19 = tpu.matmul %17, %18, %cst_11 {dimension_numbers = #tpu.dot_dimension_numbers<[1], [0], [0], [1], [0, 0, 1, 1], [], []>} : vector<4x4xbf16>, vector<4x256xbf16>, vector<4x256xf32> -> vector<4x256xf32>
      %20 = arith.mulf %4, %19 : vector<4x256xf32>
      %cst_12 = arith.constant dense<0.000000e+00> : vector<256xf32>
      %21 = vector.multi_reduction <add>, %20, %cst_12 [0] : vector<4x256xf32> to vector<256xf32>
      %22 = vector.shape_cast %21 : vector<256xf32> to vector<1x256xf32>
      %c0_13 = arith.constant 0 : index
      %c0_14 = arith.constant 0 : index
      %23 = vector.load %arg9[%c0_13, %c0_14] : memref<4x1xf32, #tpu.memory_space<vmem>>, vector<4x1xf32>
      %24 = vector.broadcast %23 : vector<4x1xf32> to vector<4x256xf32>
      %25 = arith.mulf %4, %24 : vector<4x256xf32>
      %cst_15 = arith.constant dense<0.000000e+00> : vector<256xf32>
      %26 = vector.multi_reduction <add>, %25, %cst_15 [0] : vector<4x256xf32> to vector<256xf32>
      %27 = vector.shape_cast %26 : vector<256xf32> to vector<1x256xf32>
      %28 = arith.mulf %1, %1 : vector<4x256xf32>
      %cst_16 = arith.constant dense<0.000000e+00> : vector<256xf32>
      %29 = vector.multi_reduction <add>, %28, %cst_16 [0] : vector<4x256xf32> to vector<256xf32>
      %30 = vector.shape_cast %29 : vector<256xf32> to vector<1x256xf32>
      %cst_17 = arith.constant 2.000000e+00 : f32
      %31 = vector.broadcast %cst_17 : f32 to vector<1x256xf32>
      %32 = arith.mulf %31, %22 : vector<1x256xf32>
      %33 = arith.subf %30, %32 : vector<1x256xf32>
      %34 = arith.addf %33, %27 : vector<1x256xf32>
      %cst_18 = arith.constant 0.000000e+00 : f32
      %35 = vector.broadcast %cst_18 : f32 to vector<1x256xf32>
      %36 = arith.maximumf %34, %35 : vector<1x256xf32>
      %37 = math.sqrt %36 : vector<1x256xf32>
      %cst_19 = arith.constant 5.000000e-01 : f32
      %38 = vector.broadcast %cst_19 : f32 to vector<1x256xf32>
      %39 = arith.subf %37, %38 : vector<1x256xf32>
      %cst_20 = arith.constant 0.000000e+00 : f32
      %40 = vector.broadcast %cst_20 : f32 to vector<1x256xf32>
      %41 = arith.maximumf %39, %40 : vector<1x256xf32>
      %c0_21 = arith.constant 0 : index
      %c0_22 = arith.constant 0 : index
      %42 = vector.load %arg10[%c0_21, %c0_22] : memref<1x1xf32, #tpu.memory_space<vmem>>, vector<1x1xf32>
      %43 = arith.mulf %41, %41 : vector<1x256xf32>
      %44 = arith.mulf %43, %16 : vector<1x256xf32>
      %cst_23 = arith.constant dense<0.000000e+00> : vector<1xf32>
      %45 = vector.multi_reduction <add>, %44, %cst_23 [1] : vector<1x256xf32> to vector<1xf32>
      %46 = vector.shape_cast %45 : vector<1xf32> to vector<1x1xf32>
      %47 = arith.addf %42, %46 : vector<1x1xf32>
      %c0_24 = arith.constant 0 : index
      %c0_25 = arith.constant 0 : index
      %48 = vector.load %arg10[%c0_24, %c0_25] : memref<1x1xf32, #tpu.memory_space<vmem>>, vector<1x1xf32>
      tpu.vector_store %arg10[%c0_24, %c0_25], %47 {strides = array<i32>} : memref<1x1xf32, #tpu.memory_space<vmem>>, vector<1x1xf32>,
      %c0_i32_26 = arith.constant 0 : i32
      %49 = arith.cmpi eq, %arg2, %c0_i32_26 : i32
      %50 = arith.extui %49 : i1 to i32
      %c0_i32_27 = arith.constant 0 : i32
      %51 = arith.cmpi ne, %50, %c0_i32_27 : i32
      scf.if %51 {
        %52 = arith.index_cast %arg0 : i32 to index
        %53 = memref.load %arg3[%52] : memref<2xi32, #tpu.memory_space<smem>>
        %54 = arith.sitofp %53 : i32 to f32
        %55 = tpu.iota {dimensions = array<i32: 0>} : vector<4x1xi32>
        %56 = vector.broadcast %53 : i32 to vector<4x1xi32>
        %57 = arith.cmpi slt, %55, %56 : vector<4x1xi32>
        %58 = arith.extui %57 : vector<4x1xi1> to vector<4x1xi32>
        %59 = arith.sitofp %58 : vector<4x1xi32> to vector<4x1xf32>
        %60 = tpu.iota {dimensions = array<i32: 1>} : vector<1x4xi32>
        %61 = vector.broadcast %53 : i32 to vector<1x4xi32>
        %62 = arith.cmpi slt, %60, %61 : vector<1x4xi32>
        %63 = arith.extui %62 : vector<1x4xi1> to vector<1x4xi32>
        %64 = arith.sitofp %63 : vector<1x4xi32> to vector<1x4xf32>
        %c0_28 = arith.constant 0 : index
        %c0_29 = arith.constant 0 : index
        %65 = vector.load %arg7[%c0_28, %c0_29] : memref<4x4xf32, #tpu.memory_space<vmem>>, vector<4x4xf32>
        %c0_30 = arith.constant 0 : index
        %c0_31 = arith.constant 0 : index
        %66 = vector.load %arg10[%c0_30, %c0_31] : memref<1x1xf32, #tpu.memory_space<vmem>>, vector<1x1xf32>
        %67 = vector.shape_cast %66 : vector<1x1xf32> to vector<1x1x1xf32>
        %cst_32 = arith.constant dense<0.000000e+00> : vector<1xf32>
        %68 = vector.multi_reduction <add>, %67, %cst_32 [1, 2] : vector<1x1x1xf32> to vector<1xf32>
        %69 = vector.shape_cast %68 : vector<1xf32> to vector<1x1x1xf32>
        %70 = vector.extract %69[0, 0, 0] : f32 from vector<1x1x1xf32>
        %c0_33 = arith.constant 0 : index
        %c0_34 = arith.constant 0 : index
        %71 = vector.load %arg8[%c0_33, %c0_34] : memref<4x1xf32, #tpu.memory_space<vmem>>, vector<4x1xf32>
        %72 = arith.mulf %71, %59 : vector<4x1xf32>
        %73 = vector.shape_cast %72 : vector<4x1xf32> to vector<1x4x1xf32>
        %cst_35 = arith.constant dense<0.000000e+00> : vector<1xf32>
        %74 = vector.multi_reduction <add>, %73, %cst_35 [1, 2] : vector<1x4x1xf32> to vector<1xf32>
        %75 = vector.shape_cast %74 : vector<1xf32> to vector<1x1x1xf32>
        %76 = vector.extract %75[0, 0, 0] : f32 from vector<1x1x1xf32>
        %cst_36 = arith.constant 0.000000e+00 : f32
        %77 = arith.cmpf ogt, %76, %cst_36 : f32
        %cst_37 = arith.constant 1.000000e+00 : f32
        %78 = arith.select %77, %76, %cst_37 : f32
        %79 = arith.divf %70, %78 : f32
        %80 = tpu.iota {dimensions = array<i32: 0>} : vector<4x4xi32>
        %81 = tpu.iota {dimensions = array<i32: 1>} : vector<4x4xi32>
        %82 = arith.cmpi eq, %80, %81 : vector<4x4xi32>
        %83 = arith.extui %82 : vector<4x4xi1> to vector<4x4xi32>
        %84 = arith.sitofp %83 : vector<4x4xi32> to vector<4x4xf32>
        %cst_38 = arith.constant dense<0.000000e+00> : vector<4x4xf32>
        %85 = tpu.matmul %65, %65, %cst_38 {dimension_numbers = #tpu.dot_dimension_numbers<[1], [1], [0], [0], [0, 0, 1, 0], [], []>} : vector<4x4xf32>, vector<4x4xf32>, vector<4x4xf32> -> vector<4x4xf32>
        %86 = arith.mulf %85, %84 : vector<4x4xf32>
        %cst_39 = arith.constant dense<0.000000e+00> : vector<4xf32>
        %87 = vector.multi_reduction <add>, %86, %cst_39 [1] : vector<4x4xf32> to vector<4xf32>
        %88 = vector.shape_cast %87 : vector<4xf32> to vector<4x1xf32>
        %89 = arith.mulf %85, %84 : vector<4x4xf32>
        %cst_40 = arith.constant dense<0.000000e+00> : vector<4xf32>
        %90 = vector.multi_reduction <add>, %89, %cst_40 [0] : vector<4x4xf32> to vector<4xf32>
        %91 = vector.shape_cast %90 : vector<4xf32> to vector<1x4xf32>
        %92 = vector.broadcast %88 : vector<4x1xf32> to vector<4x4xf32>
        %93 = vector.broadcast %91 : vector<1x4xf32> to vector<4x4xf32>
        %94 = arith.addf %92, %93 : vector<4x4xf32>
        %cst_41 = arith.constant 2.000000e+00 : f32
        %95 = vector.broadcast %cst_41 : f32 to vector<4x4xf32>
        %96 = arith.mulf %95, %85 : vector<4x4xf32>
        %97 = arith.subf %94, %96 : vector<4x4xf32>
        %cst_42 = arith.constant 0.000000e+00 : f32
        %98 = vector.broadcast %cst_42 : f32 to vector<4x4xf32>
        %99 = arith.maximumf %97, %98 : vector<4x4xf32>
        %100 = math.sqrt %99 : vector<4x4xf32>
        %cst_43 = arith.constant 1.000000e+00 : f32
        %101 = vector.broadcast %cst_43 : f32 to vector<4x4xf32>
        %102 = arith.subf %101, %84 : vector<4x4xf32>
        %cst_44 = arith.constant 3.000000e+00 : f32
        %103 = vector.broadcast %cst_44 : f32 to vector<4x4xf32>
        %104 = arith.mulf %103, %102 : vector<4x4xf32>
        %105 = arith.subf %104, %100 : vector<4x4xf32>
        %cst_45 = arith.constant 0.000000e+00 : f32
        %106 = vector.broadcast %cst_45 : f32 to vector<4x4xf32>
        %107 = arith.maximumf %105, %106 : vector<4x4xf32>
        %108 = arith.mulf %107, %107 : vector<4x4xf32>
        %109 = vector.broadcast %59 : vector<4x1xf32> to vector<4x4xf32>
        %110 = vector.broadcast %64 : vector<1x4xf32> to vector<4x4xf32>
        %111 = arith.mulf %109, %110 : vector<4x4xf32>
        %112 = arith.mulf %108, %111 : vector<4x4xf32>
        %113 = vector.shape_cast %112 : vector<4x4xf32> to vector<1x4x4xf32>
        %cst_46 = arith.constant dense<0.000000e+00> : vector<1xf32>
        %114 = vector.multi_reduction <add>, %113, %cst_46 [1, 2] : vector<1x4x4xf32> to vector<1xf32>
        %115 = vector.shape_cast %114 : vector<1xf32> to vector<1x1x1xf32>
        %116 = vector.extract %115[0, 0, 0] : f32 from vector<1x1x1xf32>
        %cst_47 = arith.constant 1.000000e+00 : f32
        %117 = arith.subf %54, %cst_47 : f32
        %118 = arith.mulf %54, %117 : f32
        %cst_48 = arith.constant 1.000000e+00 : f32
        %119 = arith.maximumf %118, %cst_48 : f32
        %c1_i32_49 = arith.constant 1 : i32
        %120 = arith.cmpi sgt, %53, %c1_i32_49 : i32
        %121 = arith.divf %116, %119 : f32
        %cst_50 = arith.constant 0.000000e+00 : f32
        %122 = arith.select %120, %121, %cst_50 : f32
        %c0_51 = arith.constant 0 : index
        %c0_52 = arith.constant 0 : index
        %123 = vector.load %arg9[%c0_51, %c0_52] : memref<4x1xf32, #tpu.memory_space<vmem>>, vector<4x1xf32>
        %cst_53 = arith.constant 0.000000e+00 : f32
        %124 = vector.broadcast %cst_53 : f32 to vector<4x1xf32>
        %125 = arith.maximumf %123, %124 : vector<4x1xf32>
        %126 = math.sqrt %125 : vector<4x1xf32>
        %127 = arith.mulf %126, %59 : vector<4x1xf32>
        %128 = vector.shape_cast %127 : vector<4x1xf32> to vector<1x4x1xf32>
        %cst_54 = arith.constant dense<0.000000e+00> : vector<1xf32>
        %129 = vector.multi_reduction <add>, %128, %cst_54 [1, 2] : vector<1x4x1xf32> to vector<1xf32>
        %130 = vector.shape_cast %129 : vector<1xf32> to vector<1x1x1xf32>
        %131 = vector.extract %130[0, 0, 0] : f32 from vector<1x1x1xf32>
        %cst_55 = arith.constant 1.000000e+00 : f32
        %132 = arith.maximumf %54, %cst_55 : f32
        %133 = arith.divf %131, %132 : f32
        %134 = tpu.iota {dimensions = array<i32: 1>} : vector<8x128xi32>
        %c0_i32_56 = arith.constant 0 : i32
        %135 = vector.broadcast %c0_i32_56 : i32 to vector<8x128xi32>
        %136 = arith.cmpi eq, %134, %135 : vector<8x128xi32>
        %cst_57 = arith.constant 0.000000e+00 : f32
        %137 = vector.broadcast %79 : f32 to vector<8x128xf32>
        %138 = vector.broadcast %cst_57 : f32 to vector<8x128xf32>
        %139 = arith.select %136, %137, %138 : vector<8x128xi1>, vector<8x128xf32>
        %c1_i32_58 = arith.constant 1 : i32
        %140 = vector.broadcast %c1_i32_58 : i32 to vector<8x128xi32>
        %141 = arith.cmpi eq, %134, %140 : vector<8x128xi32>
        %cst_59 = arith.constant 0.000000e+00 : f32
        %142 = vector.broadcast %122 : f32 to vector<8x128xf32>
        %143 = vector.broadcast %cst_59 : f32 to vector<8x128xf32>
        %144 = arith.select %141, %142, %143 : vector<8x128xi1>, vector<8x128xf32>
        %145 = arith.addf %139, %144 : vector<8x128xf32>
        %c2_i32 = arith.constant 2 : i32
        %146 = vector.broadcast %c2_i32 : i32 to vector<8x128xi32>
        %147 = arith.cmpi eq, %134, %146 : vector<8x128xi32>
        %cst_60 = arith.constant 0.000000e+00 : f32
        %148 = vector.broadcast %133 : f32 to vector<8x128xf32>
        %149 = vector.broadcast %cst_60 : f32 to vector<8x128xf32>
        %150 = arith.select %147, %148, %149 : vector<8x128xi1>, vector<8x128xf32>
        %151 = arith.addf %145, %150 : vector<8x128xf32>
        %c0_61 = arith.constant 0 : index
        %c0_62 = arith.constant 0 : index
        %c0_63 = arith.constant 0 : index
        %152 = vector.load %arg6[%c0_61, %c0_62, %c0_63] : memref<1x8x128xf32, #tpu.memory_space<vmem>>, vector<1x8x128xf32>
        %153 = vector.shape_cast %152 : vector<1x8x128xf32> to vector<8x128xf32>
        %154 = vector.shape_cast %151 : vector<8x128xf32> to vector<1x8x128xf32>
        tpu.vector_store %arg6[%c0_61, %c0_62, %c0_63], %154 {strides = array<i32>} : memref<1x8x128xf32, #tpu.memory_space<vmem>>, vector<1x8x128xf32>,
      } else {
      }
    } else {
    }
    return
  }
  func.func @transform_0(%arg0: i32, %arg1: i32, %arg2: i32, %arg3: memref<2xi32, #tpu.memory_space<smem>>) -> (i32, i32, i32) {
    %c0_i32 = arith.constant 0 : i32
    %0 = arith.muli %arg1, %c0_i32 : i32
    %c2_i32 = arith.constant 2 : i32
    %1 = arith.muli %c2_i32, %arg1 : i32
    %c1_i32 = arith.constant 1 : i32
    %2 = arith.subi %c1_i32, %1 : i32
    %3 = arith.muli %2, %arg2 : i32
    %4 = arith.addi %0, %3 : i32
    %c0_i32_0 = arith.constant 0 : i32
    %c0_i32_1 = arith.constant 0 : i32
    return %arg0, %c0_i32_0, %4 : i32, i32, i32
  }
  func.func @transform_1(%arg0: i32, %arg1: i32, %arg2: i32, %arg3: memref<2xi32, #tpu.memory_space<smem>>) -> (i32, i32, i32) {
    %c0_i32 = arith.constant 0 : i32
    %0 = arith.muli %arg1, %c0_i32 : i32
    %c2_i32 = arith.constant 2 : i32
    %1 = arith.muli %c2_i32, %arg1 : i32
    %c1_i32 = arith.constant 1 : i32
    %2 = arith.subi %c1_i32, %1 : i32
    %3 = arith.muli %2, %arg2 : i32
    %4 = arith.addi %0, %3 : i32
    %c0_i32_0 = arith.constant 0 : i32
    %c0_i32_1 = arith.constant 0 : i32
    return %arg0, %c0_i32_0, %4 : i32, i32, i32
  }
  func.func @transform_2(%arg0: i32, %arg1: i32, %arg2: i32, %arg3: memref<2xi32, #tpu.memory_space<smem>>) -> (i32, i32, i32) {
    %c0_i32 = arith.constant 0 : i32
    %c0_i32_0 = arith.constant 0 : i32
    %c0_i32_1 = arith.constant 0 : i32
    return %arg0, %c0_i32, %c0_i32_0 : i32, i32, i32
  }
}

</mosaic_0001>

<llo_original>
// kernel: tpu_custom_call.1
$region0: #{tpu_custom_call.1}
  #allocation0 [shape = 'u32[]', space=smem, size = 0x4, offset = 0x4, fixed_abs, tag = 'smem constant byte address 0x4 - core index']
  #allocation1 [shape = 'u32[144,128]{1,0:T(1,128)}', space=vmem, size = 0x12000, scoped, tag = 'internal scratch']
  #allocation2 [shape = 'f32[4,4]{1,0:T(4,128)}', space=vmem, size = 0x800, scoped, tag = 'scratch operand']
  #allocation3 [shape = 'f32[4,1]{1,0:T(4,128)}', space=vmem, size = 0x800, scoped, tag = 'scratch operand']
  #allocation4 [shape = 'f32[4,1]{1,0:T(4,128)}', space=vmem, size = 0x800, scoped, tag = 'scratch operand']
  #allocation5 [shape = 'f32[1,1]{1,0:T(1,128)}', space=vmem, size = 0x200, scoped, tag = 'scratch operand']
  #allocation6 [shape = 's32[1]{0}', space=sflag, size = 0x4, scoped, tag = 'scoped memory for tpu_custom_call.1']
  #allocation7 [shape = 'u8[512]{0}', space=smem, size = 0x200, scoped, tag = 'prefetched SMEM operand 0']
  %s0 = inlined_call_operand.hbm [shape: s32[2], index: 0, kind: input, shape index: {}]
  %s1 = inlined_call_operand.hbm [shape: f32[2,4,256], index: 1, kind: input, shape index: {}]
  %s2 = inlined_call_operand.hbm [shape: bf16[2,4,256], index: 2, kind: input, shape index: {}]
  %s3 = inlined_call_operand.hbm [shape: f32[2,8,128], index: 3, kind: output, shape index: {}]
  %s4 = sld [smem:[#allocation0]]
  $region73: #{tpu_custom_call.1} parent=0
    _
  %s6 = ssub.s32 1, %s4
  %s7 = scalar_select 0, %s6, %s4
  %9 = dma.hbm_to_smem %s0, 16, [#allocation7], [#allocation6]
  %10 = dma.done [#allocation6], 16
  %11 = sfence
  $region1: #{tpu_custom_call.1} parent=0
    #allocation8 [shape = 'u8[8192]{0}', space=vmem, size = 0x2000, scoped, tag = 'input window, operand 1']
    #allocation9 [shape = 's32[2]{0}', space=sflag, size = 0x8, scoped, tag = 'scoped memory for tpu_custom_call.1']
    #allocation10 [shape = 's32[2]{0}', space=sflag, size = 0x8, scoped, tag = 'scoped memory for tpu_custom_call.1']
    #allocation11 [shape = 'u8[4096]{0}', space=vmem, size = 0x1000, scoped, tag = 'input window, operand 2']
    #allocation12 [shape = 's32[2]{0}', space=sflag, size = 0x8, scoped, tag = 'scoped memory for tpu_custom_call.1']
    #allocation13 [shape = 'u8[8192]{0}', space=vmem, size = 0x2000, scoped, tag = 'output window, operand 0']
    %12 = vsyncpa [#allocation9], 0
    %s13 = scalar_lea.sflag [#allocation9], 1
    %14 = vsyncpa %s13, 0
    %15 = vsyncpa [#allocation12], 0
    %s16 = scalar_lea.sflag [#allocation12], 1
    %17 = vsyncpa %s16, 0
    %18 = vsyncpa [#allocation10], 0
    %s19 = scalar_lea.sflag [#allocation10], 1
    %20 = vsyncpa %s19, 0
    loop: start=0, step=1, limit=6
    $region2: #{tpu_custom_call.1} parent=1 // loop_pre_header
      _
    $region3: #{tpu_custom_call.1} parent=1 // loop_header
      %s22 = sphi 0, %s26
      %p23 = scmp.ge.s32.totalorder %s22, 6
      %s29 = sphi 0, %s48
      %s30 = sphi 0, %s44
      %s31 = sphi 0, %s40
      %s32 = sphi 0, %s29
      %s33 = sphi 0, %s30
      %s34 = sphi 0, %s31
      %s35 = sphi 0, %s32
      %s36 = sphi 0, %s33
      %s37 = sphi 0, %s34
      %s59 = sphi 0, %s61
      %s62 = sphi 0, %s59
      %s63 = sphi 0, %s62
      %s79 = sphi 0, %s63
      %s93 = sphi 0, %s95
      %s96 = sphi 0, %s93
      %s97 = sphi 0, %s96
      %s113 = sphi 0, %s97
      %s119 = sphi 0, %s121
      %s122 = sphi 0, %s119
      %s123 = sphi 0, %s122
      %s139 = sphi 0, %s123
    $region4: #{tpu_custom_call.1} parent=1 // loop_header_branch
      %25 = sbr.rel (%p23) target = $region8
    $region5: #{tpu_custom_call.1} parent=1 // loop_body
      %s27 = ssub.s32 %s22, 1
      %s28 = ssub.s32 %s22, 2
      %s38 = sadd.s32 1, %s31
      %p39 = scmp.ge.s32.totalorder %s38, 1
      %s40 = scalar_select %p39, 0, %s38
      %s41 = sadd.s32 1, %s30
      %s42 = scalar_select %p39, %s41, %s30
      %p43 = scmp.ge.s32.totalorder %s42, 2
      %s44 = scalar_select %p43, 0, %s42
      %s45 = sadd.s32 1, %s29
      %s46 = scalar_select %p43, %s45, %s29
      %p47 = scmp.ge.s32.totalorder %s46, 2
      %s48 = scalar_select %p47, 0, %s46
      %s49 = smul.u32 %s30, 2
      %s50 = ssub.s32 1, %s49
      %s51 = smul.u32 %s50, %s31
      %s52 = smul.u32 %s44, 2
      %s53 = ssub.s32 1, %s52
      %s54 = smul.u32 %s53, %s40
      %s55 = ssub.s32 %s29, %s48
      %s56 = ssub.s32 %s51, %s54
      %s57 = sor.u32 %s55, %s56
      %p58 = scmp.eq.s32.totalorder %s57, 0
      %s60 = sadd.s32 %s59, 1
      %s61 = scalar_select %p58, %s59, %s60
      %p64 = pneg %p58
      %p65 = scmp.eq.s32.totalorder %s22, 3
      %p66 = por %p64, %p65
      %p67 = scmp.ne.s32.totalorder %s59, %s62
      %p68 = scmp.eq.s32.totalorder %s22, 0
      %p69 = por %p67, %p68
      %p70 = scmp.ne.s32.totalorder %s59, %s62
      %p71 = scmp.eq.s32.totalorder %s27, 3
      %p72 = por %p70, %p71
      %p73 = scmp.ne.s32.totalorder %s62, %s63
      %p74 = scmp.eq.s32.totalorder %s27, 0
      %p75 = por %p73, %p74
      %p76 = scmp.ne.s32.totalorder %s62, %s63
      %p77 = scmp.eq.s32.totalorder %s28, 3
      %p78 = por %p76, %p77
      %p80 = scmp.ne.s32.totalorder %s63, %s79
      %p81 = scmp.eq.s32.totalorder %s28, 0
      %p82 = por %p80, %p81
      %s83 = smul.u32 %s30, 2
      %s84 = ssub.s32 1, %s83
      %s85 = smul.u32 %s84, %s31
      %s86 = smul.u32 %s44, 2
      %s87 = ssub.s32 1, %s86
      %s88 = smul.u32 %s87, %s40
      %s89 = ssub.s32 %s29, %s48
      %s90 = ssub.s32 %s85, %s88
      %s91 = sor.u32 %s89, %s90
      %p92 = scmp.eq.s32.totalorder %s91, 0
      %s94 = sadd.s32 %s93, 1
      %s95 = scalar_select %p92, %s93, %s94
      %p98 = pneg %p92
      %p99 = scmp.eq.s32.totalorder %s22, 3
      %p100 = por %p98, %p99
      %p101 = scmp.ne.s32.totalorder %s93, %s96
      %p102 = scmp.eq.s32.totalorder %s22, 0
      %p103 = por %p101, %p102
      %p104 = scmp.ne.s32.totalorder %s93, %s96
      %p105 = scmp.eq.s32.totalorder %s27, 3
      %p106 = por %p104, %p105
      %p107 = scmp.ne.s32.totalorder %s96, %s97
      %p108 = scmp.eq.s32.totalorder %s27, 0
      %p109 = por %p107, %p108
      %p110 = scmp.ne.s32.totalorder %s96, %s97
      %p111 = scmp.eq.s32.totalorder %s28, 3
      %p112 = por %p110, %p111
      %p114 = scmp.ne.s32.totalorder %s97, %s113
      %p115 = scmp.eq.s32.totalorder %s28, 0
      %p116 = por %p114, %p115
      %s117 = ssub.s32 %s29, %s48
      %p118 = scmp.eq.s32.totalorder %s117, 0
      %s120 = sadd.s32 %s119, 1
      %s121 = scalar_select %p118, %s119, %s120
      %p124 = pneg %p118
      %p125 = scmp.eq.s32.totalorder %s22, 3
      %p126 = por %p124, %p125
      %p127 = scmp.ne.s32.totalorder %s119, %s122
      %p128 = scmp.eq.s32.totalorder %s22, 0
      %p129 = por %p127, %p128
      %p130 = scmp.ne.s32.totalorder %s119, %s122
      %p131 = scmp.eq.s32.totalorder %s27, 3
      %p132 = por %p130, %p131
      %p133 = scmp.ne.s32.totalorder %s122, %s123
      %p134 = scmp.eq.s32.totalorder %s27, 0
      %p135 = por %p133, %p134
      %p136 = scmp.ne.s32.totalorder %s122, %s123
      %p137 = scmp.eq.s32.totalorder %s28, 3
      %p138 = por %p136, %p137
      %p140 = scmp.ne.s32.totalorder %s123, %s139
      %p141 = scmp.eq.s32.totalorder %s28, 0
      %p142 = por %p140, %p141
      %p143 = scmp.le.s32.totalorder 1, %s22
      %p144 = scmp.lt.s32.totalorder %s22, 5
      %p145 = pnand %p143, %p144
      %p146 = pneg %p145
      // Predicated region
      $region9: #{tpu_custom_call.1} parent=5 // pred_check
        _
      $region10: #{tpu_custom_call.1} parent=5 // pred_check_branch
        %148 = sbr.rel (%p145) target = $region12
      $region11: #{tpu_custom_call.1} parent=5 // pred_region
        %s149 = ssub.s32 %s22, 1
      $region12: #{tpu_custom_call.1} parent=5 // pred_fallthru
        _
      %p150 = scmp.lt.s32.totalorder %s22, 4
      // Predicated region
      $region13: #{tpu_custom_call.1} parent=5 // pred_check
        %p151 = pneg %p150
      $region14: #{tpu_custom_call.1} parent=5 // pred_check_branch
        %153 = sbr.rel (%p151) target = $region16
      $region15: #{tpu_custom_call.1} parent=5 // pred_region
        // Predicated region
        $region17: #{tpu_custom_call.1} parent=15 // pred_check
          %p154 = pneg %p69
        $region18: #{tpu_custom_call.1} parent=15 // pred_check_branch
          %156 = sbr.rel (%p154) target = $region20
        $region19: #{tpu_custom_call.1} parent=15 // pred_region
          %s157 = sand.u32 %s59, 1
          %s158 = scalar_lea.sflag [#allocation9], %s157
          %s159 = sand.u32 %s59, 1
          %s160 = smul.addr %s159, 8
          %s161 = scalar_lea.vmem [#allocation8], %s160
          %s162 = smul.u32 %s30, 2
          %s163 = ssub.s32 1, %s162
          %s164 = smul.u32 %s163, %s31
          %s165 = smul.u32 2, %s164
          %s167 = ssub.s32 128, 128
          %168 = vsyncadd %s158, %s167
          %s169 = smul.addr %s29, 2
          %s170 = sadd.s32 %s165, %s169
          %s171 = smul.addr %s170, 64
          %s172 = scalar_lea.hbm %s1, %s171
          %s174 = sshll.u32 %s161, 4
          %s175 = int_to_ptr.vmem [resolvable:$true] %s174
          %177 = dma.hbm_to_vmem [thread:$0]  %s172, 128, %s175, %s158
        $region20: #{tpu_custom_call.1} parent=15 // pred_fallthru
          _
        // Predicated region
        $region21: #{tpu_custom_call.1} parent=15 // pred_check
          %p178 = pneg %p103
        $region22: #{tpu_custom_call.1} parent=15 // pred_check_branch
          %180 = sbr.rel (%p178) target = $region24
        $region23: #{tpu_custom_call.1} parent=15 // pred_region
          %s181 = sand.u32 %s93, 1
          %s182 = scalar_lea.sflag [#allocation12], %s181
          %s183 = sand.u32 %s93, 1
          %s184 = smul.addr %s183, 4
          %s185 = scalar_lea.vmem [#allocation11], %s184
          %s186 = smul.u32 %s30, 2
          %s187 = ssub.s32 1, %s186
          %s188 = smul.u32 %s187, %s31
          %s189 = smul.u32 2, %s188
          %s191 = ssub.s32 64, 64
          %192 = vsyncadd %s182, %s191
          %s193 = smul.addr %s29, 2
          %s194 = sadd.s32 %s189, %s193
          %s195 = smul.addr %s194, 32
          %s196 = scalar_lea.hbm %s2, %s195
          %s198 = sshll.u32 %s185, 4
          %s199 = int_to_ptr.vmem [resolvable:$true] %s198
          %201 = dma.hbm_to_vmem [thread:$0]  %s196, 64, %s199, %s182
        $region24: #{tpu_custom_call.1} parent=15 // pred_fallthru
          _
      $region16: #{tpu_custom_call.1} parent=5 // pred_fallthru
        _
      %p202 = scmp.le.s32.totalorder 1, %s22
      %p203 = scmp.lt.s32.totalorder %s22, 5
      %p204 = pnand %p202, %p203
      %p205 = pneg %p204
      // Predicated region
      $region25: #{tpu_custom_call.1} parent=5 // pred_check
        _
      $region26: #{tpu_custom_call.1} parent=5 // pred_check_branch
        %207 = sbr.rel (%p204) target = $region28
      $region27: #{tpu_custom_call.1} parent=5 // pred_region
        %s208 = ssub.s32 %s22, 1
        %s209 = sand.u32 %s62, 1
        %s210 = scalar_lea.sflag [#allocation9], %s209
        %s211 = sand.u32 %s62, 1
        %s212 = smul.addr %s211, 8
        %s213 = scalar_lea.vmem [#allocation8], %s212
        // Predicated region
        $region29: #{tpu_custom_call.1} parent=27 // pred_check
          %p214 = pneg %p75
        $region30: #{tpu_custom_call.1} parent=27 // pred_check_branch
          %216 = sbr.rel (%p214) target = $region32
        $region31: #{tpu_custom_call.1} parent=27 // pred_region
          %217 = dma.done %s210, 128
        $region32: #{tpu_custom_call.1} parent=27 // pred_fallthru
          _
        %s218 = sand.u32 %s96, 1
        %s219 = scalar_lea.sflag [#allocation12], %s218
        %s220 = sand.u32 %s96, 1
        %s221 = smul.addr %s220, 4
        %s222 = scalar_lea.vmem [#allocation11], %s221
        // Predicated region
        $region33: #{tpu_custom_call.1} parent=27 // pred_check
          %p223 = pneg %p109
        $region34: #{tpu_custom_call.1} parent=27 // pred_check_branch
          %225 = sbr.rel (%p223) target = $region36
        $region35: #{tpu_custom_call.1} parent=27 // pred_region
          %226 = dma.done %s219, 64
        $region36: #{tpu_custom_call.1} parent=27 // pred_fallthru
          _
        %s227 = sand.u32 %s62, 1
        %s228 = scalar_lea.sflag [#allocation9], %s227
        %s229 = sand.u32 %s62, 1
        %s230 = smul.addr %s229, 8
        %s231 = scalar_lea.vmem [#allocation8], %s230
        %p232 = pneg %p75
        %p233 = pneg %p72
        %s234 = sand.u32 %s96, 1
        %s235 = scalar_lea.sflag [#allocation12], %s234
        %s236 = sand.u32 %s96, 1
        %s237 = smul.addr %s236, 4
        %s238 = scalar_lea.vmem [#allocation11], %s237
        %p239 = pneg %p109
        %p240 = pneg %p106
        %p241 = pneg %p135
        %p242 = pneg %p132
        %s243 = sand.u32 %s122, 1
        %s244 = scalar_lea.sflag [#allocation10], %s243
        %s245 = sand.u32 %s122, 1
        %s246 = smul.addr %s245, 8
        %s247 = scalar_lea.vmem [#allocation13], %s246
        %s248 = smul.u32 %s33, 2
        %s249 = ssub.s32 1, %s248
        %s250 = smul.u32 %s249, %s34
        %s251 = smul.u32 2, %s250
        %s252 = smul.u32 %s33, 2
        %s253 = ssub.s32 1, %s252
        %s254 = smul.u32 %s253, %s34
        %s255 = smul.u32 2, %s254
        %v257 = vld [vmem:[%s213] sm:$0xff]
        %v258 = vld [vmem:[%s222] sm:$0xf]
        %v259 = vunpack.c.l.bf16 %v258
        %p260 = scmp.eq.s32.totalorder %s33, 0
        // Predicated region
        $region37: #{tpu_custom_call.1} parent=27 // pred_check
          %p261 = pneg %p260
        $region38: #{tpu_custom_call.1} parent=27 // pred_check_branch
          %263 = sbr.rel (%p261) target = $region40
        $region39: #{tpu_custom_call.1} parent=27 // pred_region
          %p264 = scmp.eq.s32.totalorder %s34, 0
          // Predicated region
          $region41: #{tpu_custom_call.1} parent=39 // pred_check
            %p265 = pneg %p264
          $region42: #{tpu_custom_call.1} parent=39 // pred_check_branch
            %267 = sbr.rel (%p265) target = $region44
          $region43: #{tpu_custom_call.1} parent=39 // pred_region
            %vm268 = vcmask 27648
            %269 = vst.msk [vmem:[#allocation2] sm:$0xf] %vm268, 0.0
            %vm270 = vcmask 3072
            %271 = vst.msk [vmem:[#allocation3] sm:$0xf] %vm270, 0.0
          $region44: #{tpu_custom_call.1} parent=39 // pred_fallthru
            _
          %v272 = vld [vmem:[#allocation2] sm:$0xf]
          %v274 = vcombine.high %v257, %v257
          %v276 = vpack.c.bf16 %v257, %v257
          %v277 = vpack.c.bf16 %v274, %v274
          %v280 = vunpack.c.l.s4 1983009808
          %v281 = vunpack.c.0.s8 %v280
          %v282 = vlaneseq
          %v283 = vshrl.u32 %v282, 7
          %v284 = vsub.s32 %v281, %v283
          %v285 = vrot.slane %v258, %v284
          %v286 = vcombine.high %v285, %v285
          %289 = vmatprep.subr.bf16.mxu0 %v277
          %290 = vmatpush1.bf16.xpose.msra.mxu0 %v276
          %291 = vmatprep.subr.bf16.mxu0 0
          %292 = vmatpush1.bf16.xpose.msra.mxu0 0
          %293 = vmatprep.subr.bf16.mxu0 0
          %294 = vmatpush1.bf16.xpose.msra.mxu0 0
          %295 = vmatprep.subr.bf16.mxu0 0
          %296 = vmatpush1.bf16.xpose.msra.mxu0 0
          %297 = vmatprep.subr.bf16.mxu0 0
          %298 = vmatpush1.bf16.xpose.msra.mxu0 0
          %299 = vmatprep.subr.bf16.mxu0 0
          %300 = vmatpush1.bf16.xpose.msra.mxu0 0
          %301 = vmatprep.subr.bf16.mxu0 0
          %302 = vmatpush1.bf16.xpose.msra.mxu0 0
          %303 = vmatprep.subr.bf16.mxu0 0
          %304 = vmatpush1.bf16.xpose.msra.mxu0 0
          %305 = vmatprep.subr.bf16.mxu0 0
          %306 = vmatpush1.bf16.xpose.msra.mxu0 0
          %307 = vmatprep.subr.bf16.mxu0 0
          %308 = vmatpush1.bf16.xpose.msra.mxu0 0
          %309 = vmatprep.subr.bf16.mxu0 0
          %310 = vmatpush1.bf16.xpose.msra.mxu0 0
          %311 = vmatprep.subr.bf16.mxu0 0
          %312 = vmatpush1.bf16.xpose.msra.mxu0 0
          %313 = vmatprep.subr.bf16.mxu0 0
          %314 = vmatpush1.bf16.xpose.msra.mxu0 0
          %315 = vmatprep.subr.bf16.mxu0 0
          %316 = vmatpush1.bf16.xpose.msra.mxu0 0
          %317 = vmatprep.subr.bf16.mxu0 0
          %318 = vmatpush1.bf16.xpose.msra.mxu0 0
          %319 = vmatprep.subr.bf16.mxu0 0
          %320 = vmatpush1.bf16.xpose.msra.mxu0 0
          %321 = vmatprep.mubr.bf16.mxu0 %v286
          %322 = vmatmul.mubr.bf16.gmra.mrb[0].mxu0 %v285
          %v323 = vpop.f32.mrb[0].mxu0
          %v324 = vadd.f32 0.0, %v323
          %v325 = vpop.f32.mrb[0].mxu0
          %v326 = vpop.f32.mrb[0].mxu0
          %v327 = vpop.f32.mrb[0].mxu0
          %328 = vdwg.mxu0
          %v329 = vadd.f32 %v272, %v324
          %vm330 = vcmask 27648
          %331 = vst.msk [vmem:[#allocation2] sm:$0xf] %vm330, %v329
          %v332 = vld [vmem:[#allocation3] sm:$0xf]
          %v334 = vcombine.high %v259, %v259
          %vm336 = vcmask 1043456
          %v337 = vsel %vm336, %v259, 0.0
          %v338 = vsel %vm336, %v334, 0.0
          %v339 = vadd.f32 %v337, %v338
          %340 = vadd.xlane.f32.xlu0 %v339
          %v341 = vpop.xlane.xlu0 %340
          %v342 = vadd.f32 %v332, %v341
          %vm343 = vcmask 3072
          %344 = vst.msk [vmem:[#allocation3] sm:$0xf] %vm343, %v342
          // Predicated region
          $region45: #{tpu_custom_call.1} parent=39 // pred_check
            %p345 = pneg %p264
          $region46: #{tpu_custom_call.1} parent=39 // pred_check_branch
            %347 = sbr.rel (%p345) target = $region48
          $region47: #{tpu_custom_call.1} parent=39 // pred_region
            %v348 = vld [vmem:[#allocation3] sm:$0xf]
            %v349 = vld [vmem:[#allocation2] sm:$0xf]
            %vm350 = vcmp.gt.f32.partialorder %v348, 0.0
            %v351 = vsel %vm350, %v348, 1.0
            %353 = vset.pattern.permute.xlu0 0
            %354 = vperm.xlu0 %353, %v351
            %v355 = vpop.permute.xlu0 %354
            %v357 = vrcp.pop %v355
            %v358 = vmul.f32 %v349, %v357
            %359 = vst.msk [vmem:[#allocation2] sm:$0xf] %vm330, %v358
            %v360 = vmul.f32 %v358, %v358
            %v361 = vsel %vm330, %v360, 0.0
            %362 = vadd.xlane.f32.xlu0 %v361
            %v363 = vpop.xlane.xlu0 %362
            %364 = vst.msk [vmem:[#allocation4] sm:$0xf] %vm343, %v363
          $region48: #{tpu_custom_call.1} parent=39 // pred_fallthru
            _
        $region40: #{tpu_custom_call.1} parent=27 // pred_fallthru
          _
        %p365 = scmp.eq.s32.totalorder %s33, 1
        // Predicated region
        $region49: #{tpu_custom_call.1} parent=27 // pred_check
          %p366 = pneg %p365
        $region50: #{tpu_custom_call.1} parent=27 // pred_check_branch
          %368 = sbr.rel (%p366) target = $region52
        $region51: #{tpu_custom_call.1} parent=27 // pred_region
          %p369 = scmp.eq.s32.totalorder %s34, 0
          // Predicated region
          $region53: #{tpu_custom_call.1} parent=51 // pred_check
            %p370 = pneg %p369
          $region54: #{tpu_custom_call.1} parent=51 // pred_check_branch
            %372 = sbr.rel (%p370) target = $region56
          $region55: #{tpu_custom_call.1} parent=51 // pred_region
            %vm373 = vcmask 0
            %374 = vst.msk [vmem:[#allocation5] sm:$0x1] %vm373, 0.0
          $region56: #{tpu_custom_call.1} parent=51 // pred_fallthru
            _
          %v375 = vld [vmem:[#allocation2] sm:$0xf]
          %v377 = vcombine.high %v259, %v259
          %vm379 = vcmask 1043456
          %v380 = vsel %vm379, %v259, 0.0
          %v381 = vrot.slane %v380, 4
          %v382 = vadd.f32 %v380, %v381
          %v383 = vrot.slane %v382, 2
          %v384 = vadd.f32 %v382, %v383
          %v385 = vrot.slane %v384, 1
          %v386 = vadd.f32 %v384, %v385
          %v387 = vsel %vm379, %v377, 0.0
          %v388 = vrot.slane %v387, 4
          %v389 = vadd.f32 %v387, %v388
          %v390 = vrot.slane %v389, 2
          %v391 = vadd.f32 %v389, %v390
          %v392 = vrot.slane %v391, 1
          %v393 = vadd.f32 %v391, %v392
          %v394 = vpack.c.bf16 %v375, %v375
          %v396 = vcombine.high %v257, %v257
          %v398 = vpack.c.bf16 %v257, %v257
          %v399 = vpack.c.bf16 %v396, %v396
          %vm400 = vcmask 31744
          %v402 = vsel %vm400, %v394, 0
          %vm404 = vcmask 1041408
          %v406 = vsel %vm404, %v398, 0
          %v409 = vsel %vm404, %v399, 0
          %411 = vmatprep.subr.bf16.mxu0 %v409
          %412 = vmatpush1.bf16.msra.mxu0 %v406
          %413 = vmatprep.subr.bf16.mxu0 0
          %414 = vmatpush1.bf16.msra.mxu0 0
          %415 = vmatprep.subr.bf16.mxu0 0
          %416 = vmatpush1.bf16.msra.mxu0 0
          %417 = vmatprep.subr.bf16.mxu0 0
          %418 = vmatpush1.bf16.msra.mxu0 0
          %419 = vmatprep.subr.bf16.mxu0 0
          %420 = vmatpush1.bf16.msra.mxu0 0
          %421 = vmatprep.subr.bf16.mxu0 0
          %422 = vmatpush1.bf16.msra.mxu0 0
          %423 = vmatprep.subr.bf16.mxu0 0
          %424 = vmatpush1.bf16.msra.mxu0 0
          %425 = vmatprep.subr.bf16.mxu0 0
          %426 = vmatpush1.bf16.msra.mxu0 0
          %427 = vmatprep.subr.bf16.mxu0 0
          %428 = vmatpush1.bf16.msra.mxu0 0
          %429 = vmatprep.subr.bf16.mxu0 0
          %430 = vmatpush1.bf16.msra.mxu0 0
          %431 = vmatprep.subr.bf16.mxu0 0
          %432 = vmatpush1.bf16.msra.mxu0 0
          %433 = vmatprep.subr.bf16.mxu0 0
          %434 = vmatpush1.bf16.msra.mxu0 0
          %435 = vmatprep.subr.bf16.mxu0 0
          %436 = vmatpush1.bf16.msra.mxu0 0
          %437 = vmatprep.subr.bf16.mxu0 0
          %438 = vmatpush1.bf16.msra.mxu0 0
          %439 = vmatprep.subr.bf16.mxu0 0
          %440 = vmatpush1.bf16.msra.mxu0 0
          %441 = vmatprep.subr.bf16.mxu0 0
          %442 = vmatpush1.bf16.msra.mxu0 0
          %443 = vmatprep.mubr.bf16.mxu0 0
          %444 = vmatmul.mubr.bf16.gmra.mrb[0].mxu0 %v402
          %v445 = vpop.f32.mrb[0].mxu0
          %v446 = vadd.f32 0.0, %v445
          %v447 = vpop.f32.mrb[0].mxu0
          %v448 = vadd.f32 0.0, %v447
          %v449 = vpop.f32.mrb[0].mxu0
          %v450 = vpop.f32.mrb[0].mxu0
          %451 = vdwg.mxu0
          %v454 = vcombine.low %v446, %v448
          %v456 = vmul.f32 %v259, %v454
          %v458 = vcombine.high %v456, %v456
          %v460 = vsel %vm379, %v456, 0.0
          %v461 = vrot.slane %v460, 4
          %v462 = vadd.f32 %v460, %v461
          %v463 = vrot.slane %v462, 2
          %v464 = vadd.f32 %v462, %v463
          %v465 = vrot.slane %v464, 1
          %v466 = vadd.f32 %v464, %v465
          %v467 = vsel %vm379, %v458, 0.0
          %v468 = vrot.slane %v467, 4
          %v469 = vadd.f32 %v467, %v468
          %v470 = vrot.slane %v469, 2
          %v471 = vadd.f32 %v469, %v470
          %v472 = vrot.slane %v471, 1
          %v473 = vadd.f32 %v471, %v472
          %v474 = vld [vmem:[#allocation4] sm:$0xf]
          %476 = vset.pattern.permute.xlu0 0
          %477 = vperm.xlu0 %476, %v474
          %v478 = vpop.permute.xlu0 %477
          %v480 = vunpack.c.l.s4 839922192
          %v481 = vunpack.c.0.s8 %v480
          %v482 = vlaneseq
          %v483 = vshrl.u32 %v482, 7
          %v484 = vsub.s32 %v481, %v483
          %v485 = vrot.slane %v478, %v484
          %v487 = vmul.f32 %v259, %v485
          %v489 = vcombine.high %v487, %v487
          %v491 = vsel %vm379, %v487, 0.0
          %v492 = vrot.slane %v491, 4
          %v493 = vadd.f32 %v491, %v492
          %v494 = vrot.slane %v493, 2
          %v495 = vadd.f32 %v493, %v494
          %v496 = vrot.slane %v495, 1
          %v497 = vadd.f32 %v495, %v496
          %v498 = vsel %vm379, %v489, 0.0
          %v499 = vrot.slane %v498, 4
          %v500 = vadd.f32 %v498, %v499
          %v501 = vrot.slane %v500, 2
          %v502 = vadd.f32 %v500, %v501
          %v503 = vrot.slane %v502, 1
          %v504 = vadd.f32 %v502, %v503
          %v505 = vmul.f32 %v257, %v257
          %v507 = vcombine.high %v505, %v505
          %v509 = vsel %vm379, %v505, 0.0
          %v510 = vrot.slane %v509, 4
          %v511 = vadd.f32 %v509, %v510
          %v512 = vrot.slane %v511, 2
          %v513 = vadd.f32 %v511, %v512
          %v514 = vrot.slane %v513, 1
          %v515 = vadd.f32 %v513, %v514
          %v516 = vsel %vm379, %v507, 0.0
          %v517 = vrot.slane %v516, 4
          %v518 = vadd.f32 %v516, %v517
          %v519 = vrot.slane %v518, 2
          %v520 = vadd.f32 %v518, %v519
          %v521 = vrot.slane %v520, 1
          %v522 = vadd.f32 %v520, %v521
          %v523 = vmul.f32 %v466, 2.0
          %v524 = vmul.f32 %v473, 2.0
          %v525 = vsub.f32 %v515, %v523
          %v526 = vsub.f32 %v522, %v524
          %v527 = vadd.f32 %v525, %v497
          %v528 = vadd.f32 %v526, %v504
          %v529 = vmax.f32 %v527, 0.0
          %v530 = vmax.f32 %v528, 0.0
          %v531 = vrsqrt.pop %v529
          %v532 = vmul.f32 %v529, %v531
          %vm533 = vcmp.eq.f32.partialorder %v529, inf
          %v534 = vsel %vm533, %v529, %v532
          %vm535 = vcmp.eq.f32.partialorder %v529, 0.0
          %v536 = vand.u32 %v529, 2147483648
          %v537 = vsel %vm535, %v536, %v534
          %v538 = vrsqrt.pop %v530
          %v539 = vmul.f32 %v530, %v538
          %vm540 = vcmp.eq.f32.partialorder %v530, inf
          %v541 = vsel %vm540, %v530, %v539
          %vm542 = vcmp.eq.f32.partialorder %v530, 0.0
          %v543 = vand.u32 %v530, 2147483648
          %v544 = vsel %vm542, %v543, %v541
          %v545 = vsub.f32 %v537, 0.5
          %v546 = vsub.f32 %v544, 0.5
          %v547 = vmax.f32 %v545, 0.0
          %v548 = vmax.f32 %v546, 0.0
          %v549 = vld [vmem:[#allocation5] sm:$0x1]
          %v550 = vmul.f32 %v547, %v547
          %v551 = vmul.f32 %v548, %v548
          %v552 = vmul.f32 %v550, %v386
          %v553 = vmul.f32 %v551, %v393
          %v554 = vadd.f32 %v552, %v553
          %555 = vadd.xlane.f32.xlu0 %v554
          %v556 = vpop.xlane.xlu0 %555
          %v557 = vadd.f32 %v549, %v556
          %vm558 = vcmask 0
          %559 = vst.msk [vmem:[#allocation5] sm:$0x1] %vm558, %v557
          // Predicated region
          $region57: #{tpu_custom_call.1} parent=51 // pred_check
            %p560 = pneg %p369
          $region58: #{tpu_custom_call.1} parent=51 // pred_check_branch
            %562 = sbr.rel (%p560) target = $region60
          $region59: #{tpu_custom_call.1} parent=51 // pred_region
            %s563 = sld [smem:[#allocation7 + %s32]]
            %s564 = scvt.s32.f32 %s563
            %v565 = vlaneseq
            %v566 = vshrl.u32 %v565, 7
            %v567 = vstv %s563
            %vm568 = vcmp.lt.s32.totalorder %v566, %v567
            %v569 = vsel %vm568, 1, 0
            %v570 = vcvt.s32.f32 %v569
            %v571 = vlaneseq
            %v572 = vand.u32 %v571, 127
            %vm573 = vcmp.lt.s32.totalorder %v572, %v567
            %v574 = vsel %vm573, 1, 0
            %v575 = vcvt.s32.f32 %v574
            %v576 = vld [vmem:[#allocation2] sm:$0xf]
            %v577 = vld [vmem:[#allocation5] sm:$0x1]
            %v578 = vadd.f32 %v577, 0.0
            %s579 = vtos %v578
            %v580 = vld [vmem:[#allocation3] sm:$0xf]
            %v581 = vmul.f32 %v580, %v570
            %vm582 = vcmask 3072
            %v583 = vsel %vm582, %v581, 0.0
            %584 = vadd.xlane.f32.xlu0 %v583
            %v585 = vpop.xlane.xlu0 %584
            %v586 = vrot.slane %v585, 4
            %v587 = vadd.f32 %v585, %v586
            %v588 = vrot.slane %v587, 2
            %v589 = vadd.f32 %v587, %v588
            %v590 = vrot.slane %v589, 1
            %v591 = vadd.f32 %v589, %v590
            %s592 = vtos %v591
            %p593 = scmp.gt.f32.partialorder %s592, 0.0
            %s594 = scalar_select %p593, %s592, 1.0
            %v595 = vstv %s594
            %v596 = vrcp.pop %v595
            %s597 = vtos %v596
            %s598 = smul.f32 %s579, %s597
            %vm599 = vcmp.eq.s32.totalorder %v566, %v572
            %v600 = vsel %vm599, 1, 0
            %v601 = vcvt.s32.f32 %v600
            %v603 = vsel %vm400, %v576, 0
            %605 = vmatprep.subr.mxu0 0.0
            %606 = vmatpush1.xpose.msra.mxu0 %v603
            %607 = vmatprep.subr.mxu0 0.0
            %608 = vmatpush1.xpose.msra.mxu0 0.0
            %609 = vmatprep.subr.mxu0 0.0
            %610 = vmatpush1.xpose.msra.mxu0 0.0
            %611 = vmatprep.subr.mxu0 0.0
            %612 = vmatpush1.xpose.msra.mxu0 0.0
            %613 = vmatprep.subr.mxu0 0.0
            %614 = vmatpush1.xpose.msra.mxu0 0.0
            %615 = vmatprep.subr.mxu0 0.0
            %616 = vmatpush1.xpose.msra.mxu0 0.0
            %617 = vmatprep.subr.mxu0 0.0
            %618 = vmatpush1.xpose.msra.mxu0 0.0
            %619 = vmatprep.subr.mxu0 0.0
            %620 = vmatpush1.xpose.msra.mxu0 0.0
            %621 = vmatprep.subr.mxu0 0.0
            %622 = vmatpush1.xpose.msra.mxu0 0.0
            %623 = vmatprep.subr.mxu0 0.0
            %624 = vmatpush1.xpose.msra.mxu0 0.0
            %625 = vmatprep.subr.mxu0 0.0
            %626 = vmatpush1.xpose.msra.mxu0 0.0
            %627 = vmatprep.subr.mxu0 0.0
            %628 = vmatpush1.xpose.msra.mxu0 0.0
            %629 = vmatprep.subr.mxu0 0.0
            %630 = vmatpush1.xpose.msra.mxu0 0.0
            %631 = vmatprep.subr.mxu0 0.0
            %632 = vmatpush1.xpose.msra.mxu0 0.0
            %633 = vmatprep.subr.mxu0 0.0
            %634 = vmatpush1.xpose.msra.mxu0 0.0
            %635 = vmatprep.subr.mxu0 0.0
            %636 = vmatpush1.xpose.msra.mxu0 0.0
            %637 = vmatprep.subr.mxu0 0.0
            %638 = vmatpush1.xpose.msra.mxu0 0.0
            %639 = vmatprep.subr.mxu0 0.0
            %640 = vmatpush1.xpose.msra.mxu0 0.0
            %641 = vmatprep.subr.mxu0 0.0
            %642 = vmatpush1.xpose.msra.mxu0 0.0
            %643 = vmatprep.subr.mxu0 0.0
            %644 = vmatpush1.xpose.msra.mxu0 0.0
            %645 = vmatprep.subr.mxu0 0.0
            %646 = vmatpush1.xpose.msra.mxu0 0.0
            %647 = vmatprep.subr.mxu0 0.0
            %648 = vmatpush1.xpose.msra.mxu0 0.0
            %649 = vmatprep.subr.mxu0 0.0
            %650 = vmatpush1.xpose.msra.mxu0 0.0
            %651 = vmatprep.subr.mxu0 0.0
            %652 = vmatpush1.xpose.msra.mxu0 0.0
            %653 = vmatprep.subr.mxu0 0.0
            %654 = vmatpush1.xpose.msra.mxu0 0.0
            %655 = vmatprep.subr.mxu0 0.0
            %656 = vmatpush1.xpose.msra.mxu0 0.0
            %657 = vmatprep.subr.mxu0 0.0
            %658 = vmatpush1.xpose.msra.mxu0 0.0
            %659 = vmatprep.subr.mxu0 0.0
            %660 = vmatpush1.xpose.msra.mxu0 0.0
            %661 = vmatprep.subr.mxu0 0.0
            %662 = vmatpush1.xpose.msra.mxu0 0.0
            %663 = vmatprep.subr.mxu0 0.0
            %664 = vmatpush1.xpose.msra.mxu0 0.0
            %665 = vmatprep.subr.mxu0 0.0
            %666 = vmatpush1.xpose.msra.mxu0 0.0
            %667 = vmatprep.subr.mxu0 0.0
            %668 = vmatpush1.xpose.msra.mxu0 0.0
            %669 = vmatprep.mubr.f32.mxu0 0.0
            %670 = vmatmul.mubr.f32.gmra.mrb[0].mxu0 %v603
            %v671 = vpop.f32.mrb[0].mxu0
            %v672 = vadd.f32 0.0, %v671
            %v673 = vpop.f32.mrb[0].mxu0
            %674 = vdwg.mxu0
            %v675 = vmul.f32 %v672, %v601
            %vm676 = vcmask 27648
            %v677 = vsel %vm676, %v675, 0.0
            %678 = vadd.xlane.f32.xlu0 %v677
            %v679 = vpop.xlane.xlu0 %678
            %v680 = vrot.slane %v677, 4
            %v681 = vadd.f32 %v677, %v680
            %v682 = vrot.slane %v681, 2
            %v683 = vadd.f32 %v681, %v682
            %v684 = vrot.slane %v683, 1
            %v685 = vadd.f32 %v683, %v684
            %v686 = vadd.f32 %v679, %v685
            %v687 = vmul.f32 %v672, 2.0
            %v688 = vsub.f32 %v686, %v687
            %v689 = vmax.f32 %v688, 0.0
            %v690 = vrsqrt.pop %v689
            %v691 = vmul.f32 %v689, %v690
            %vm692 = vcmp.eq.f32.partialorder %v689, inf
            %v693 = vsel %vm692, %v689, %v691
            %vm694 = vcmp.eq.f32.partialorder %v689, 0.0
            %v695 = vand.u32 %v689, 2147483648
            %v696 = vsel %vm694, %v695, %v693
            %v697 = vsub.f32 1.0, %v601
            %v698 = vmul.f32 %v697, 3.0
            %v699 = vsub.f32 %v698, %v696
            %v700 = vmax.f32 %v699, 0.0
            %v701 = vmul.f32 %v700, %v700
            %v702 = vmul.f32 %v570, %v575
            %v703 = vmul.f32 %v701, %v702
            %v704 = vsel %vm676, %v703, 0.0
            %705 = vadd.xlane.f32.xlu0 %v704
            %v706 = vpop.xlane.xlu0 %705
            %v707 = vrot.slane %v706, 4
            %v708 = vadd.f32 %v706, %v707
            %v709 = vrot.slane %v708, 2
            %v710 = vadd.f32 %v708, %v709
            %v711 = vrot.slane %v710, 1
            %v712 = vadd.f32 %v710, %v711
            %s713 = vtos %v712
            %s714 = ssub.f32 %s564, 1.0
            %s715 = smul.f32 %s564, %s714
            %s716 = smax.f32 %s715, 1.0
            %p717 = scmp.gt.s32.totalorder %s563, 1
            %v718 = vstv %s716
            %v719 = vrcp.pop %v718
            %s720 = vtos %v719
            %s721 = smul.f32 %s713, %s720
            %s722 = scalar_select %p717, %s721, 0.0
            %v723 = vld [vmem:[#allocation4] sm:$0xf]
            %v724 = vmax.f32 %v723, 0.0
            %v725 = vrsqrt.pop %v724
            %v726 = vmul.f32 %v724, %v725
            %vm727 = vcmp.eq.f32.partialorder %v724, inf
            %v728 = vsel %vm727, %v724, %v726
            %vm729 = vcmp.eq.f32.partialorder %v724, 0.0
            %v730 = vand.u32 %v724, 2147483648
            %v731 = vsel %vm729, %v730, %v728
            %v732 = vmul.f32 %v731, %v570
            %v733 = vsel %vm582, %v732, 0.0
            %734 = vadd.xlane.f32.xlu0 %v733
            %v735 = vpop.xlane.xlu0 %734
            %v736 = vrot.slane %v735, 4
            %v737 = vadd.f32 %v735, %v736
            %v738 = vrot.slane %v737, 2
            %v739 = vadd.f32 %v737, %v738
            %v740 = vrot.slane %v739, 1
            %v741 = vadd.f32 %v739, %v740
            %s742 = vtos %v741
            %s743 = smax.f32 %s564, 1.0
            %v744 = vstv %s743
            %v745 = vrcp.pop %v744
            %s746 = vtos %v745
            %s747 = smul.f32 %s742, %s746
            %vm748 = vcmp.eq.s32.totalorder %v572, 0
            %v749 = vstv %s598
            %v750 = vsel %vm748, %v749, 0.0
            %vm751 = vcmp.eq.s32.totalorder %v572, 1
            %v752 = vstv %s722
            %v753 = vsel %vm751, %v752, 0.0
            %v754 = vadd.f32 %v750, %v753
            %vm755 = vcmp.eq.s32.totalorder %v572, 2
            %v756 = vstv %s747
            %v757 = vsel %vm755, %v756, 0.0
            %v758 = vadd.f32 %v754, %v757
            %759 = vst [vmem:[%s247] sm:$0xff] %v758
          $region60: #{tpu_custom_call.1} parent=51 // pred_fallthru
            _
        $region52: #{tpu_custom_call.1} parent=27 // pred_fallthru
          _
        %s760 = sand.u32 %s122, 1
        %s761 = scalar_lea.sflag [#allocation10], %s760
        %s762 = sand.u32 %s122, 1
        %s763 = smul.addr %s762, 8
        %s764 = scalar_lea.vmem [#allocation13], %s763
        // Predicated region
        $region61: #{tpu_custom_call.1} parent=27 // pred_check
          %p765 = pneg %p132
        $region62: #{tpu_custom_call.1} parent=27 // pred_check_branch
          %767 = sbr.rel (%p765) target = $region64
        $region63: #{tpu_custom_call.1} parent=27 // pred_region
          %s769 = ssub.s32 128, 128
          %770 = vsyncadd %s761, %s769
          %s771 = smul.addr %s32, 128
          %s772 = scalar_lea.hbm %s3, %s771
          %s774 = sshll.u32 %s764, 4
          %s775 = int_to_ptr.vmem [resolvable:$true] %s774
          %777 = dma.vmem_to_hbm [thread:$0]  %s775, 128, %s772, %s761
        $region64: #{tpu_custom_call.1} parent=27 // pred_fallthru
          _
      $region28: #{tpu_custom_call.1} parent=5 // pred_fallthru
        _
      %p778 = scmp.le.s32.totalorder 2, %s22
      // Predicated region
      $region65: #{tpu_custom_call.1} parent=5 // pred_check
        %p779 = pneg %p778
      $region66: #{tpu_custom_call.1} parent=5 // pred_check_branch
        %781 = sbr.rel (%p779) target = $region68
      $region67: #{tpu_custom_call.1} parent=5 // pred_region
        %s782 = ssub.s32 %s22, 2
        // Predicated region
        $region69: #{tpu_custom_call.1} parent=67 // pred_check
          %p783 = pneg %p138
        $region70: #{tpu_custom_call.1} parent=67 // pred_check_branch
          %785 = sbr.rel (%p783) target = $region72
        $region71: #{tpu_custom_call.1} parent=67 // pred_region
          %s786 = sand.u32 %s123, 1
          %s787 = scalar_lea.sflag [#allocation10], %s786
          %s788 = sand.u32 %s123, 1
          %s789 = smul.addr %s788, 8
          %s790 = scalar_lea.vmem [#allocation13], %s789
          %791 = dma.done %s787, 128
        $region72: #{tpu_custom_call.1} parent=67 // pred_fallthru
          _
      $region68: #{tpu_custom_call.1} parent=5 // pred_fallthru
        _
    $region6: #{tpu_custom_call.1} parent=1 // loop_footer
      %s26 = sadd.s32 1, %s22
    $region7: #{tpu_custom_call.1} parent=1 // loop_footer_branch
      %21 = sbr.rel target = $region3
    $region8: #{tpu_custom_call.1} parent=1 // loop_exit
      _
    %792 = vsyncpa [#allocation9], 1
    %s793 = scalar_lea.sflag [#allocation9], 1
    %794 = vsyncpa %s793, 1
    %795 = vsyncpa [#allocation12], 1
    %s796 = scalar_lea.sflag [#allocation12], 1
    %797 = vsyncpa %s796, 1
    %798 = vsyncpa [#allocation10], 1
    %s799 = scalar_lea.sflag [#allocation10], 1
    %800 = vsyncpa %s799, 1

</llo_original>
